<compile_context>
chip_gen: v7x
topology: tpu7x:2x2x1
jax: 0.10.0
libtpu: 0.0.40
codegen_flags: <defaults>
</compile_context>

<pallas_src>
import functools

import jax
import jax.numpy as jnp
from jax.experimental import pallas as pl
from jax.experimental.pallas import tpu as pltpu

LANES = 128                      # vreg lane width (last dim is lane-dense)
SUBLANES = 8                     # f32 sublane granularity
MAX_BLOCK_ROWS = 4096            # 4096 x 128 f32 = 2 MiB per input block
VMEM_LIMIT_BYTES = 32 * 1024 * 1024


# ---------------------------------------------------------------------------
# Per-element focal-loss math (shared by both kernels; VPU + one EUP exp)
# ---------------------------------------------------------------------------
def _focal_loss_terms(x, t, gamma, alpha):
    # One exp per element, reused for the stable BCE *and* the sigmoid.
    e = jnp.exp(-jnp.abs(x))                               # EUP
    ce = jnp.maximum(x, 0.0) - x * t + jnp.log1p(e)        # stable BCE-with-logits
    inv = 1.0 / (1.0 + e)                                  # exact divide
    p = jnp.where(x >= 0.0, inv, e * inv)                  # == sigmoid(x), stable
    p_t = p * t + (1.0 - p) * (1.0 - t)
    one_m = 1.0 - p_t
    g = float(gamma)
    if g == 0.0:
        loss = ce
    elif g == 1.0:
        loss = ce * one_m
    elif g == 2.0:                                         # default: plain VPU muls
        loss = ce * (one_m * one_m)
    else:
        loss = ce * one_m ** jnp.float32(g)
    if alpha >= 0:                                         # static branch (as in module)
        loss = (alpha * t + (1.0 - alpha) * (1.0 - t)) * loss
    return loss


# ---------------------------------------------------------------------------
# Kernels
# ---------------------------------------------------------------------------
def _focal_partial_sum_kernel(x_ref, t_ref, o_ref, *, gamma, alpha,
                              n_valid, block_rows, num_blocks):
    """Per-block focal loss + (8,128) partial sum; mask only on the tail block."""
    i = pl.program_id(0)
    x = x_ref[...].astype(jnp.float32)
    t = t_ref[...].astype(jnp.float32)
    loss = _focal_loss_terms(x, t, gamma, alpha)

    def fold(l):
        # (block_rows,128) -> (block_rows//8, 8, 128) is layout-preserving;
        # the axis-0 sum is plain elementwise vreg adds (VPU, no XLU).
        return jnp.sum(l.reshape(-1, SUBLANES, LANES), axis=0)

    if num_blocks * block_rows * LANES > n_valid:   # static: tail needs masking
        last = num_blocks - 1

        @pl.when(i != last)                          # unmasked fast path
        def _():
            o_ref[...] = fold(loss)

        @pl.when(i == last)                          # masked tail block
        def _():
            rows, cols = loss.shape
            r = jax.lax.broadcasted_iota(jnp.int32, (rows, cols), 0)
            c = jax.lax.broadcasted_iota(jnp.int32, (rows, cols), 1)
            grow = i * block_rows + r                # global row; int32-safe
            full_rows = n_valid // LANES
            rem = n_valid % LANES
            valid = (grow < full_rows) | ((grow == full_rows) & (c < rem))
            o_ref[...] = fold(jnp.where(valid, loss, 0.0))
    else:
        o_ref[...] = fold(loss)


def _focal_elem_kernel(x_ref, t_ref, o_ref, *, gamma, alpha):
    """Per-element focal loss (reduction='none'), lane-dense, native out dtype."""
    x = x_ref[...].astype(jnp.float32)
    t = t_ref[...].astype(jnp.float32)
    o_ref[...] = _focal_loss_terms(x, t, gamma, alpha).astype(o_ref.dtype)


# ---------------------------------------------------------------------------
# Wrapper
# ---------------------------------------------------------------------------
def _lane_dense_2d(a):
    """Flatten (native dtype) to (rows_pad, 128), rows_pad % 8 == 0.

    Only the <=1023-element remainder is zero-padded; when n % 1024 == 0 this
    is a pure reshape (no HBM copy).
    """
    n = a.size
    flat = jnp.ravel(a)
    rows_pad = max(SUBLANES, pl.cdiv(pl.cdiv(n, LANES), SUBLANES) * SUBLANES)
    pad = rows_pad * LANES - n
    if pad:
        flat = jnp.pad(flat, (0, pad))
    return flat.reshape(rows_pad, LANES)


def focal_loss(inputs, targets, gamma=2.0, alpha=0.25, reduction="mean"):
    assert inputs.shape == targets.shape
    n = inputs.size
    x2 = _lane_dense_2d(inputs)
    t2 = _lane_dense_2d(targets)
    rows_pad = x2.shape[0]

    block_rows = min(MAX_BLOCK_ROWS, rows_pad)          # multiple of 8 by construction
    num_blocks = pl.cdiv(rows_pad, block_rows)          # ragged tail handled in-kernel
    grid = (num_blocks,)
    in_blk = pl.BlockSpec((block_rows, LANES), lambda i: (i, 0))
    cparams = pltpu.CompilerParams(
        dimension_semantics=("parallel",),              # no carried state -> both TCs on v7x
        vmem_limit_bytes=VMEM_LIMIT_BYTES)

    if reduction in ("mean", "sum"):
        kernel = functools.partial(
            _focal_partial_sum_kernel, gamma=float(gamma), alpha=float(alpha),
            n_valid=n, block_rows=block_rows, num_blocks=num_blocks)
        partials = pl.pallas_call(
            kernel,
            out_shape=jax.ShapeDtypeStruct((num_blocks * SUBLANES, LANES), jnp.float32),
            grid=grid,
            in_specs=[in_blk, in_blk],
            out_specs=pl.BlockSpec((SUBLANES, LANES), lambda i: (i, 0)),
            compiler_params=cparams,
        )(x2, t2)
        total = jnp.sum(partials)                       # tiny final reduce outside kernel
        return total / n if reduction == "mean" else total

    # reduction='none'  (PyTorch returns the unreduced loss for any other string)
    out_dtype = inputs.dtype if jnp.issubdtype(inputs.dtype, jnp.floating) else jnp.float32
    kernel = functools.partial(
        _focal_elem_kernel, gamma=float(gamma), alpha=float(alpha))
    out = pl.pallas_call(
        kernel,
        out_shape=jax.ShapeDtypeStruct((rows_pad, LANES), out_dtype),
        grid=grid,
        in_specs=[in_blk, in_blk],
        out_specs=in_blk,
        compiler_params=cparams,
    )(x2, t2)
    flat = out.reshape(-1)
    if flat.size != n:                                  # free when n % 1024 == 0
        flat = flat[:n]
    return flat.reshape(inputs.shape)


class FocalLoss:
    """Mirror of the PyTorch module (size_average unused, as in the original)."""

    def __init__(self, gamma=2, alpha=0.25, size_average=True):
        self.gamma = gamma
        self.alpha = alpha
        self.size_average = size_average

    def __call__(self, inputs, targets, reduction="mean"):
        return focal_loss(inputs, targets, self.gamma, self.alpha, reduction)


# ---------------------------------------------------------------------------
# Pure-JAX reference (PyTorch semantics) for the correctness check
# ---------------------------------------------------------------------------
def focal_loss_ref(x, t, gamma=2.0, alpha=0.25, reduction="mean"):
    p = jax.nn.sigmoid(x)
    ce = jnp.maximum(x, 0.0) - x * t + jnp.log1p(jnp.exp(-jnp.abs(x)))
    p_t = p * t + (1.0 - p) * (1.0 - t)
    loss = ce * (1.0 - p_t) ** gamma
    if alpha >= 0:
        loss = (alpha * t + (1.0 - alpha) * (1.0 - t)) * loss
    if reduction == "mean":
        return loss.mean()
    if reduction == "sum":
        return loss.sum()
    return loss


if __name__ == "__main__":
    key = jax.random.PRNGKey(0)
    k_x, k_t = jax.random.split(key)

    shape = (2, 4, 16, 16)                       # (batch, channels, H, W) logits
    logits = 2.0 * jax.random.normal(k_x, shape, jnp.float32)
    targets = jax.random.bernoulli(k_t, 0.3, shape).astype(jnp.float32)

    loss_mod = FocalLoss(gamma=2, alpha=0.25)

    mean_fn = jax.jit(lambda a, b: loss_mod(a, b))                      # 'mean'
    sum_fn = jax.jit(lambda a, b: loss_mod(a, b, reduction="sum"))      # 'sum'
    none_fn = jax.jit(lambda a, b: loss_mod(a, b, reduction="none"))    # 'none'

    loss_mean = jax.block_until_ready(mean_fn(logits, targets))
    loss_sum = jax.block_until_ready(sum_fn(logits, targets))
    loss_none = jax.block_until_ready(none_fn(logits, targets))

    ref_mean = focal_loss_ref(logits, targets, 2.0, 0.25, "mean")
    ref_sum = focal_loss_ref(logits, targets, 2.0, 0.25, "sum")
    ref_none = focal_loss_ref(logits, targets, 2.0, 0.25, "none")

    assert jnp.allclose(loss_mean, ref_mean, rtol=1e-5, atol=1e-6), (loss_mean, ref_mean)
    assert jnp.allclose(loss_sum, ref_sum, rtol=1e-5, atol=1e-5), (loss_sum, ref_sum)
    assert loss_none.shape == shape and loss_none.dtype == logits.dtype
    assert jnp.allclose(loss_none, ref_none, rtol=1e-5, atol=1e-6)

    # Native-dtype (bf16) path: inputs stay bf16 through HBM, cast in-kernel,
    # output preserves bf16 (matches PyTorch dtype-preserving behavior).
    logits_bf16 = logits.astype(jnp.bfloat16)
    targets_bf16 = targets.astype(jnp.bfloat16)
    loss_bf16 = jax.block_until_ready(none_fn(logits_bf16, targets_bf16))
    assert loss_bf16.dtype == jnp.bfloat16
    ref_bf16 = focal_loss_ref(logits_bf16.astype(jnp.float32),
                              targets_bf16.astype(jnp.float32), 2.0, 0.25, "none")
    assert jnp.allclose(loss_bf16.astype(jnp.float32), ref_bf16, rtol=5e-2, atol=5e-2)

    print("KERNEL_OK")
</pallas_src>

<mosaic_0001>
module attributes {stable_mosaic.version = 11 : i64} {
  func.func @_focal_partial_sum_kernel(%arg0: i32, %arg1: memref<16x128xf32, #tpu.memory_space<vmem>>, %arg2: memref<16x128xf32, #tpu.memory_space<vmem>>, %arg3: memref<8x128xf32, #tpu.memory_space<vmem>>) attributes {dimension_semantics = [#tpu.dimension_semantics<parallel>], iteration_bounds = array<i64: 1>, scalar_prefetch = 0 : i64, scratch_operands = 0 : i64, tpu.core_type = #tpu.core_type<tc>, window_params = [{transform_indices = @transform_0, window_bounds = array<i64: 16, 128>}, {transform_indices = @transform_1, window_bounds = array<i64: 16, 128>}, {transform_indices = @transform_2, window_bounds = array<i64: 8, 128>}]} {
    %c0 = arith.constant 0 : index
    %c0_0 = arith.constant 0 : index
    %0 = vector.load %arg1[%c0, %c0_0] : memref<16x128xf32, #tpu.memory_space<vmem>>, vector<16x128xf32>
    %c0_1 = arith.constant 0 : index
    %c0_2 = arith.constant 0 : index
    %1 = vector.load %arg2[%c0_1, %c0_2] : memref<16x128xf32, #tpu.memory_space<vmem>>, vector<16x128xf32>
    %2 = math.absf %0 : vector<16x128xf32>
    %cst = arith.constant 0.000000e+00 : f32
    %3 = vector.broadcast %cst : f32 to vector<16x128xf32>
    %4 = arith.subf %3, %2 : vector<16x128xf32>
    %5 = math.exp %4 : vector<16x128xf32>
    %cst_3 = arith.constant 0.000000e+00 : f32
    %6 = vector.broadcast %cst_3 : f32 to vector<16x128xf32>
    %7 = arith.maximumf %0, %6 : vector<16x128xf32>
    %8 = arith.mulf %0, %1 : vector<16x128xf32>
    %9 = arith.subf %7, %8 : vector<16x128xf32>
    %10 = math.log1p %5 : vector<16x128xf32>
    %11 = arith.addf %9, %10 : vector<16x128xf32>
    %cst_4 = arith.constant 1.000000e+00 : f32
    %12 = vector.broadcast %cst_4 : f32 to vector<16x128xf32>
    %13 = arith.addf %12, %5 : vector<16x128xf32>
    %cst_5 = arith.constant 1.000000e+00 : f32
    %14 = vector.broadcast %cst_5 : f32 to vector<16x128xf32>
    %15 = arith.divf %14, %13 : vector<16x128xf32>
    %cst_6 = arith.constant 0.000000e+00 : f32
    %16 = vector.broadcast %cst_6 : f32 to vector<16x128xf32>
    %17 = arith.cmpf oge, %0, %16 : vector<16x128xf32>
    %18 = arith.mulf %5, %15 : vector<16x128xf32>
    %19 = arith.select %17, %15, %18 : vector<16x128xi1>, vector<16x128xf32>
    %20 = arith.mulf %19, %1 : vector<16x128xf32>
    %cst_7 = arith.constant 1.000000e+00 : f32
    %21 = vector.broadcast %cst_7 : f32 to vector<16x128xf32>
    %22 = arith.subf %21, %19 : vector<16x128xf32>
    %cst_8 = arith.constant 1.000000e+00 : f32
    %23 = vector.broadcast %cst_8 : f32 to vector<16x128xf32>
    %24 = arith.subf %23, %1 : vector<16x128xf32>
    %25 = arith.mulf %22, %24 : vector<16x128xf32>
    %26 = arith.addf %20, %25 : vector<16x128xf32>
    %cst_9 = arith.constant 1.000000e+00 : f32
    %27 = vector.broadcast %cst_9 : f32 to vector<16x128xf32>
    %28 = arith.subf %27, %26 : vector<16x128xf32>
    %29 = arith.mulf %28, %28 : vector<16x128xf32>
    %30 = arith.mulf %11, %29 : vector<16x128xf32>
    %cst_10 = arith.constant 2.500000e-01 : f32
    %31 = vector.broadcast %cst_10 : f32 to vector<16x128xf32>
    %32 = arith.mulf %31, %1 : vector<16x128xf32>
    %cst_11 = arith.constant 1.000000e+00 : f32
    %33 = vector.broadcast %cst_11 : f32 to vector<16x128xf32>
    %34 = arith.subf %33, %1 : vector<16x128xf32>
    %cst_12 = arith.constant 7.500000e-01 : f32
    %35 = vector.broadcast %cst_12 : f32 to vector<16x128xf32>
    %36 = arith.mulf %35, %34 : vector<16x128xf32>
    %37 = arith.addf %32, %36 : vector<16x128xf32>
    %38 = arith.mulf %37, %30 : vector<16x128xf32>
    %39 = vector.shape_cast %38 : vector<16x128xf32> to vector<2x8x128xf32>
    %cst_13 = arith.constant dense<0.000000e+00> : vector<8x128xf32>
    %40 = vector.multi_reduction <add>, %39, %cst_13 [0] : vector<2x8x128xf32> to vector<8x128xf32>
    %c0_14 = arith.constant 0 : index
    %c0_15 = arith.constant 0 : index
    %41 = vector.load %arg3[%c0_14, %c0_15] : memref<8x128xf32, #tpu.memory_space<vmem>>, vector<8x128xf32>
    tpu.vector_store %arg3[%c0_14, %c0_15], %40 {strides = array<i32>} : memref<8x128xf32, #tpu.memory_space<vmem>>, vector<8x128xf32>,
    return
  }
  func.func @transform_0(%arg0: i32) -> (i32, i32) {
    %c0_i32 = arith.constant 0 : i32
    %c0_i32_0 = arith.constant 0 : i32
    return %arg0, %c0_i32 : i32, i32
  }
  func.func @transform_1(%arg0: i32) -> (i32, i32) {
    %c0_i32 = arith.constant 0 : i32
    %c0_i32_0 = arith.constant 0 : i32
    return %arg0, %c0_i32 : i32, i32
  }
  func.func @transform_2(%arg0: i32) -> (i32, i32) {
    %c0_i32 = arith.constant 0 : i32
    %c0_i32_0 = arith.constant 0 : i32
    return %arg0, %c0_i32 : i32, i32
  }
}

</mosaic_0001>

<llo_original>
// kernel: _lambda_.1
$region0: #{_lambda_.1}
  #allocation0 [shape = 'u32[]', space=smem, size = 0x4, offset = 0x4, fixed_abs, tag = 'smem constant byte address 0x4 - core index']
  #allocation1 [shape = 'u32[144,128]{1,0:T(1,128)}', space=vmem, size = 0x12000, scoped, tag = 'internal scratch']
  %s0 = inlined_call_operand.vmem [shape: f32[16,128], index: 0, kind: input, shape index: {}]
  %s1 = inlined_call_operand.vmem [shape: f32[16,128], index: 1, kind: input, shape index: {}]
  %s2 = inlined_call_operand.vmem [shape: f32[8,128], index: 2, kind: output, shape index: {}]
  %s3 = sld [smem:[#allocation0]]
  $region18: #{_lambda_.1} parent=0
    _
  %s5 = ssub.s32 1, %s3
  %s6 = scalar_select 0, %s5, %s3
  // Predicated region
  $region2: #{_lambda_.1} parent=0 // pred_check
    _
  $region3: #{_lambda_.1} parent=0 // pred_check_branch
    %8 = sbr.rel (0) target = $region5
  $region4: #{_lambda_.1} parent=0 // pred_region
    _
  $region5: #{_lambda_.1} parent=0 // pred_fallthru
    _
  // Predicated region
  $region6: #{_lambda_.1} parent=0 // pred_check
    _
  $region7: #{_lambda_.1} parent=0 // pred_check_branch
    %10 = sbr.rel (0) target = $region9
  $region8: #{_lambda_.1} parent=0 // pred_region
    _
  $region9: #{_lambda_.1} parent=0 // pred_fallthru
    _
  %v11 = vld [vmem:[%s0] sm:$0xff]
  %v12 = vld [vmem:[%s0 + $0x8] sm:$0xff]
  %v13 = vld [vmem:[%s1] sm:$0xff]
  %v14 = vld [vmem:[%s1 + $0x8] sm:$0xff]
  %v15 = vand.u32 2147483647, %v11
  %v16 = vand.u32 2147483647, %v12
  %v17 = vsub.f32 0.0, %v15
  %v18 = vsub.f32 0.0, %v16
  %v19 = vmul.f32 %v17, 1.442695
  %v20 = vpow.pop %v19
  %v21 = vmul.f32 %v18, 1.442695
  %v22 = vpow.pop %v21
  %v23 = vmax.f32 %v11, 0.0
  %v24 = vmax.f32 %v12, 0.0
  %v25 = vmul.f32 %v11, %v13
  %v26 = vmul.f32 %v12, %v14
  %v27 = vsub.f32 %v23, %v25
  %v28 = vsub.f32 %v24, %v26
  %v29 = vadd.f32 %v20, 1.0
  %v30 = vlog2.pop %v29
  %v31 = vmul.f32 %v30, 0.6931472
  %v32 = vmul.f32 -0.5, %v20
  %v33 = vadd.f32 %v32, 1.0
  %v34 = vmul.f32 %v33, %v20
  %v35 = vand.u32 2147483647, %v20
  %vm36 = vcmp.lt.f32.partialorder %v35, 0.0004427343
  %v37 = vsel %vm36, %v34, %v31
  %v38 = vadd.f32 %v22, 1.0
  %v39 = vlog2.pop %v38
  %v40 = vmul.f32 %v39, 0.6931472
  %v41 = vmul.f32 -0.5, %v22
  %v42 = vadd.f32 %v41, 1.0
  %v43 = vmul.f32 %v42, %v22
  %v44 = vand.u32 2147483647, %v22
  %vm45 = vcmp.lt.f32.partialorder %v44, 0.0004427343
  %v46 = vsel %vm45, %v43, %v40
  %v47 = vadd.f32 %v27, %v37
  %v48 = vadd.f32 %v28, %v46
  %v49 = vadd.f32 %v20, 1.0
  %v50 = vadd.f32 %v22, 1.0
  %v51 = vrcp.pop %v49
  %v52 = vmul.f32 1.0, %v51
  %v53 = vrcp.pop %v50
  %v54 = vmul.f32 1.0, %v53
  %vm55 = vcmp.ge.f32.partialorder %v11, 0.0
  %vm56 = vcmp.ge.f32.partialorder %v12, 0.0
  %v57 = vmul.f32 %v20, %v52
  %v58 = vmul.f32 %v22, %v54
  %v59 = vsel %vm55, %v52, %v57
  %v60 = vsel %vm56, %v54, %v58
  %v61 = vmul.f32 %v59, %v13
  %v62 = vmul.f32 %v60, %v14
  %v63 = vsub.f32 1.0, %v59
  %v64 = vsub.f32 1.0, %v60
  %v65 = vsub.f32 1.0, %v13
  %v66 = vsub.f32 1.0, %v14
  %v67 = vmul.f32 %v63, %v65
  %v68 = vmul.f32 %v64, %v66
  %v69 = vadd.f32 %v61, %v67
  %v70 = vadd.f32 %v62, %v68
  %v71 = vsub.f32 1.0, %v69
  %v72 = vsub.f32 1.0, %v70
  %v73 = vmul.f32 %v71, %v71
  %v74 = vmul.f32 %v72, %v72
  %v75 = vmul.f32 %v47, %v73
  %v76 = vmul.f32 %v48, %v74
  %v77 = vmul.f32 %v13, 0.25
  %v78 = vmul.f32 %v14, 0.25
  %v79 = vmul.f32 %v65, 0.75
  %v80 = vmul.f32 %v66, 0.75
  %v81 = vadd.f32 %v77, %v79
  %v82 = vadd.f32 %v78, %v80
  %v83 = vmul.f32 %v81, %v75
  %v84 = vmul.f32 %v82, %v76
  %v85 = vadd.f32 %v83, %v84
  %86 = vst [vmem:[%s2] sm:$0xff] %v85
  // Predicated region
  $region10: #{_lambda_.1} parent=0 // pred_check
    _
  $region11: #{_lambda_.1} parent=0 // pred_check_branch
    %88 = sbr.rel (0) target = $region13
  $region12: #{_lambda_.1} parent=0 // pred_region
    _
  $region13: #{_lambda_.1} parent=0 // pred_fallthru
    _
  // Predicated region
  $region14: #{_lambda_.1} parent=0 // pred_check
    _
  $region15: #{_lambda_.1} parent=0 // pred_check_branch
    %90 = sbr.rel (0) target = $region17
  $region16: #{_lambda_.1} parent=0 // pred_region
    _
  $region17: #{_lambda_.1} parent=0 // pred_fallthru
    _

</llo_original>
